<compile_context>
chip_gen: v6e
topology: v6e:2x2x1
jax: 0.10.0
libtpu: 0.0.40
codegen_flags: <defaults>
</compile_context>

<pallas_src>
import functools

import jax
import jax.numpy as jnp
from jax.experimental import pallas as pl
from jax.experimental.pallas import tpu as pltpu

_LANE = 128
_SUBLANE = 8
_DEFAULT_TILE_ROWS = 4096  # 4096*128*4B = 2 MiB per input block


def _round_up(a, b):
    return (a + b - 1) // b * b


def _quantile_loss_kernel(q, inv_n, x_ref, t_ref, out_ref, acc_ref):
    j = pl.program_id(1)

    @pl.when(j == 0)
    def _():
        acc_ref[...] = jnp.zeros_like(acc_ref)

    x = x_ref[0].astype(jnp.float32)              # (tile_rows, 128)
    t = t_ref[0].astype(jnp.float32)
    d = t - x
    val = jnp.maximum((q - 1.0) * d, q * d)
    # VPU-only accumulation: fold the tile's sublane groups onto the (8,128)
    # vector accumulator (no per-step XLU reduce, no serializing scalar RMW).
    acc_ref[...] += val.reshape(-1, _SUBLANE, _LANE).sum(axis=0)

    @pl.when(j == pl.num_programs(1) - 1)
    def _():
        # Fold the mean into the finalize; per-split partial written lane-dense.
        out_ref[0] = acc_ref[...] * inv_n


def quantile_loss(inputs, targets, quantile, *, tile_rows=_DEFAULT_TILE_ROWS):
    """mean(max((q-1)*(targets-inputs), q*(targets-inputs))) over all elements."""
    assert inputs.shape == targets.shape
    n_elems = inputs.size

    rows_needed = pl.cdiv(n_elems, _LANE)
    tile_rows = min(tile_rows, _round_up(rows_needed, _SUBLANE))
    tile_rows = max(_SUBLANE, _round_up(tile_rows, _SUBLANE))

    # Split the row range across a leading "parallel" axis (2-TC on v7x) when
    # there is enough work for at least one tile per split.
    nsplit = 2 if rows_needed >= 2 * tile_rows else 1

    padded_rows = _round_up(rows_needed, tile_rows * nsplit)
    total_padded = padded_rows * _LANE
    pad = total_padded - n_elems

    flat_x = inputs.reshape(-1)
    flat_t = targets.reshape(-1)
    if pad:
        # Single pad pass; equal (zero) padding -> diff = 0 -> contributes 0.
        # TODO(synk): in-kernel tail masking would avoid this extra HBM pass.
        flat_x = jnp.pad(flat_x, (0, pad))
        flat_t = jnp.pad(flat_t, (0, pad))

    rows_per_split = padded_rows // nsplit
    x3 = flat_x.reshape(nsplit, rows_per_split, _LANE)
    t3 = flat_t.reshape(nsplit, rows_per_split, _LANE)

    grid = (nsplit, rows_per_split // tile_rows)
    kernel = functools.partial(
        _quantile_loss_kernel, float(quantile), 1.0 / float(n_elems)
    )

    partials = pl.pallas_call(
        kernel,
        out_shape=jax.ShapeDtypeStruct((nsplit, _SUBLANE, _LANE), jnp.float32),
        grid_spec=pltpu.PrefetchScalarGridSpec(
            num_scalar_prefetch=0,
            grid=grid,
            in_specs=[
                pl.BlockSpec((1, tile_rows, _LANE), lambda i, j: (i, j, 0)),
                pl.BlockSpec((1, tile_rows, _LANE), lambda i, j: (i, j, 0)),
            ],
            out_specs=pl.BlockSpec((1, _SUBLANE, _LANE), lambda i, j: (i, 0, 0)),
            scratch_shapes=[pltpu.VMEM((_SUBLANE, _LANE), jnp.float32)],
        ),
        compiler_params=pltpu.CompilerParams(
            dimension_semantics=("parallel", "arbitrary"),
        ),
    )(x3, t3)

    # Partials are already scaled by 1/n; summing them yields the mean.
    return jnp.sum(partials).astype(jnp.float32)


if __name__ == "__main__":
    key = jax.random.PRNGKey(0)
    k1, k2 = jax.random.split(key)
    # Small shapes consistent with a generic regression output, e.g. (B, C, H, W)
    inputs = jax.random.normal(k1, (2, 4, 16, 16), dtype=jnp.float32)
    targets = jax.random.normal(k2, (2, 4, 16, 16), dtype=jnp.float32)
    q = 0.9

    out = quantile_loss(inputs, targets, q)
    out = jax.block_until_ready(out)

    # Reference check (plain JAX)
    d = targets - inputs
    ref = jnp.mean(jnp.maximum((q - 1.0) * d, q * d))
    assert jnp.allclose(out, ref, atol=1e-5, rtol=1e-5), (out, ref)

    print("KERNEL_OK")
</pallas_src>

<mosaic_0001>
module attributes {stable_mosaic.version = 11 : i64} {
  func.func @_quantile_loss_kernel(%arg0: i32, %arg1: i32, %arg2: memref<1x16x128xf32, #tpu.memory_space<vmem>>, %arg3: memref<1x16x128xf32, #tpu.memory_space<vmem>>, %arg4: memref<1x8x128xf32, #tpu.memory_space<vmem>>, %arg5: memref<8x128xf32, #tpu.memory_space<vmem>>) attributes {dimension_semantics = [#tpu.dimension_semantics<parallel>, #tpu.dimension_semantics<arbitrary>], iteration_bounds = array<i64: 1, 1>, scalar_prefetch = 0 : i64, scratch_operands = 1 : i64, tpu.core_type = #tpu.core_type<tc>, window_params = [{transform_indices = @transform_0, window_bounds = array<i64: 1, 16, 128>}, {transform_indices = @transform_1, window_bounds = array<i64: 1, 16, 128>}, {transform_indices = @transform_2, window_bounds = array<i64: 1, 8, 128>}]} {
    %c0_i32 = arith.constant 0 : i32
    %0 = arith.cmpi eq, %arg1, %c0_i32 : i32
    %1 = arith.extui %0 : i1 to i32
    %c0_i32_0 = arith.constant 0 : i32
    %2 = arith.cmpi ne, %1, %c0_i32_0 : i32
    scf.if %2 {
      %cst_14 = arith.constant 0.000000e+00 : f32
      %21 = vector.broadcast %cst_14 : f32 to vector<8x128xf32>
      %c0_15 = arith.constant 0 : index
      %c0_16 = arith.constant 0 : index
      %22 = vector.load %arg5[%c0_15, %c0_16] : memref<8x128xf32, #tpu.memory_space<vmem>>, vector<8x128xf32>
      tpu.vector_store %arg5[%c0_15, %c0_16], %21 {strides = array<i32>} : memref<8x128xf32, #tpu.memory_space<vmem>>, vector<8x128xf32>,
    } else {
    }
    %c0 = arith.constant 0 : index
    %c0_1 = arith.constant 0 : index
    %c0_2 = arith.constant 0 : index
    %3 = vector.load %arg2[%c0, %c0_1, %c0_2] : memref<1x16x128xf32, #tpu.memory_space<vmem>>, vector<1x16x128xf32>
    %4 = vector.shape_cast %3 : vector<1x16x128xf32> to vector<16x128xf32>
    %c0_3 = arith.constant 0 : index
    %c0_4 = arith.constant 0 : index
    %c0_5 = arith.constant 0 : index
    %5 = vector.load %arg3[%c0_3, %c0_4, %c0_5] : memref<1x16x128xf32, #tpu.memory_space<vmem>>, vector<1x16x128xf32>
    %6 = vector.shape_cast %5 : vector<1x16x128xf32> to vector<16x128xf32>
    %7 = arith.subf %6, %4 : vector<16x128xf32>
    %cst = arith.constant -1.000000e-01 : f32
    %8 = vector.broadcast %cst : f32 to vector<16x128xf32>
    %9 = arith.mulf %8, %7 : vector<16x128xf32>
    %cst_6 = arith.constant 0.899999976 : f32
    %10 = vector.broadcast %cst_6 : f32 to vector<16x128xf32>
    %11 = arith.mulf %10, %7 : vector<16x128xf32>
    %12 = arith.maximumf %9, %11 : vector<16x128xf32>
    %c0_7 = arith.constant 0 : index
    %c0_8 = arith.constant 0 : index
    %13 = vector.load %arg5[%c0_7, %c0_8] : memref<8x128xf32, #tpu.memory_space<vmem>>, vector<8x128xf32>
    %14 = vector.shape_cast %12 : vector<16x128xf32> to vector<2x8x128xf32>
    %cst_9 = arith.constant dense<0.000000e+00> : vector<8x128xf32>
    %15 = vector.multi_reduction <add>, %14, %cst_9 [0] : vector<2x8x128xf32> to vector<8x128xf32>
    %16 = arith.addf %13, %15 : vector<8x128xf32>
    %c0_10 = arith.constant 0 : index
    %c0_11 = arith.constant 0 : index
    %17 = vector.load %arg5[%c0_10, %c0_11] : memref<8x128xf32, #tpu.memory_space<vmem>>, vector<8x128xf32>
    tpu.vector_store %arg5[%c0_10, %c0_11], %16 {strides = array<i32>} : memref<8x128xf32, #tpu.memory_space<vmem>>, vector<8x128xf32>,
    %c0_i32_12 = arith.constant 0 : i32
    %18 = arith.cmpi eq, %arg1, %c0_i32_12 : i32
    %19 = arith.extui %18 : i1 to i32
    %c0_i32_13 = arith.constant 0 : i32
    %20 = arith.cmpi ne, %19, %c0_i32_13 : i32
    scf.if %20 {
      %c0_14 = arith.constant 0 : index
      %c0_15 = arith.constant 0 : index
      %21 = vector.load %arg5[%c0_14, %c0_15] : memref<8x128xf32, #tpu.memory_space<vmem>>, vector<8x128xf32>
      %cst_16 = arith.constant 4.8828125E-4 : f32
      %22 = vector.broadcast %cst_16 : f32 to vector<8x128xf32>
      %23 = arith.mulf %21, %22 : vector<8x128xf32>
      %c0_17 = arith.constant 0 : index
      %c0_18 = arith.constant 0 : index
      %c0_19 = arith.constant 0 : index
      %24 = vector.load %arg4[%c0_17, %c0_18, %c0_19] : memref<1x8x128xf32, #tpu.memory_space<vmem>>, vector<1x8x128xf32>
      %25 = vector.shape_cast %24 : vector<1x8x128xf32> to vector<8x128xf32>
      %26 = vector.shape_cast %23 : vector<8x128xf32> to vector<1x8x128xf32>
      tpu.vector_store %arg4[%c0_17, %c0_18, %c0_19], %26 {strides = array<i32>} : memref<1x8x128xf32, #tpu.memory_space<vmem>>, vector<1x8x128xf32>,
    } else {
    }
    return
  }
  func.func @transform_0(%arg0: i32, %arg1: i32) -> (i32, i32, i32) {
    %c0_i32 = arith.constant 0 : i32
    %c0_i32_0 = arith.constant 0 : i32
    return %arg0, %arg1, %c0_i32 : i32, i32, i32
  }
  func.func @transform_1(%arg0: i32, %arg1: i32) -> (i32, i32, i32) {
    %c0_i32 = arith.constant 0 : i32
    %c0_i32_0 = arith.constant 0 : i32
    return %arg0, %arg1, %c0_i32 : i32, i32, i32
  }
  func.func @transform_2(%arg0: i32, %arg1: i32) -> (i32, i32, i32) {
    %c0_i32 = arith.constant 0 : i32
    %c0_i32_0 = arith.constant 0 : i32
    %c0_i32_1 = arith.constant 0 : i32
    return %arg0, %c0_i32, %c0_i32_0 : i32, i32, i32
  }
}

</mosaic_0001>

<llo_original>
// kernel: tpu_custom_call.1
$region0: #{tpu_custom_call.1}
  #allocation0 [shape = 'u32[]', space=smem, size = 0x4, offset = 0x4, fixed_abs, tag = 'smem constant byte address 0x4 - core index']
  #allocation1 [shape = 'u32[144,128]{1,0:T(1,128)}', space=vmem, size = 0x12000, scoped, tag = 'internal scratch']
  #allocation2 [shape = 'f32[8,128]{1,0:T(8,128)}', space=vmem, size = 0x1000, scoped, tag = 'scratch operand']
  %s0 = inlined_call_operand.hbm [shape: f32[1,16,128], index: 0, kind: input, shape index: {}]
  %s1 = inlined_call_operand.hbm [shape: f32[1,16,128], index: 1, kind: input, shape index: {}]
  %s2 = inlined_call_operand.hbm [shape: f32[1,8,128], index: 2, kind: output, shape index: {}]
  %s3 = sld [smem:[#allocation0]]
  $region34: #{tpu_custom_call.1} parent=0
    _
  %s5 = ssub.s32 1, %s3
  %s6 = scalar_select 0, %s5, %s3
  $region1: #{tpu_custom_call.1} parent=0
    #allocation3 [shape = 'u8[8192]{0}', space=vmem, size = 0x2000, scoped, tag = 'input window, operand 0, single buffered']
    #allocation4 [shape = 's32[1]{0}', space=sflag, size = 0x4, scoped, tag = 'scoped memory for tpu_custom_call.1']
    #allocation5 [shape = 's32[1]{0}', space=sflag, size = 0x4, scoped, tag = 'scoped memory for tpu_custom_call.1']
    #allocation6 [shape = 'u8[8192]{0}', space=vmem, size = 0x2000, scoped, tag = 'input window, operand 1, single buffered']
    #allocation7 [shape = 's32[1]{0}', space=sflag, size = 0x4, scoped, tag = 'scoped memory for tpu_custom_call.1']
    #allocation8 [shape = 'u8[4096]{0}', space=vmem, size = 0x1000, scoped, tag = 'output window, operand 0, single buffered']
    %7 = vsyncpa [#allocation4], 0
    %8 = vsyncpa [#allocation7], 0
    %9 = vsyncpa [#allocation5], 0
    // Predicated region
    $region2: #{tpu_custom_call.1} parent=1 // pred_check
      _
    $region3: #{tpu_custom_call.1} parent=1 // pred_check_branch
      %11 = sbr.rel (0) target = $region5
    $region4: #{tpu_custom_call.1} parent=1 // pred_region
      %s13 = ssub.s32 256, 256
      %14 = vsyncadd [#allocation4], %s13
      %s15 = sshll.u32 [#allocation3], 4
      %s16 = int_to_ptr.vmem [resolvable:$true] %s15
      %21 = dma.hbm_to_vmem [thread:$0]  %s0, 256, %s16, [#allocation4], 128, 128, 8
    $region5: #{tpu_custom_call.1} parent=1 // pred_fallthru
      _
    // Predicated region
    $region6: #{tpu_custom_call.1} parent=1 // pred_check
      _
    $region7: #{tpu_custom_call.1} parent=1 // pred_check_branch
      %23 = sbr.rel (0) target = $region9
    $region8: #{tpu_custom_call.1} parent=1 // pred_region
      %s25 = ssub.s32 256, 256
      %26 = vsyncadd [#allocation7], %s25
      %s27 = sshll.u32 [#allocation6], 4
      %s28 = int_to_ptr.vmem [resolvable:$true] %s27
      %33 = dma.hbm_to_vmem [thread:$0]  %s1, 256, %s28, [#allocation7], 128, 128, 8
    $region9: #{tpu_custom_call.1} parent=1 // pred_fallthru
      _
    // Predicated region
    $region10: #{tpu_custom_call.1} parent=1 // pred_check
      _
    $region11: #{tpu_custom_call.1} parent=1 // pred_check_branch
      %35 = sbr.rel (0) target = $region13
    $region12: #{tpu_custom_call.1} parent=1 // pred_region
      %36 = dma.done [#allocation4], 256
    $region13: #{tpu_custom_call.1} parent=1 // pred_fallthru
      _
    // Predicated region
    $region14: #{tpu_custom_call.1} parent=1 // pred_check
      _
    $region15: #{tpu_custom_call.1} parent=1 // pred_check_branch
      %38 = sbr.rel (0) target = $region17
    $region16: #{tpu_custom_call.1} parent=1 // pred_region
      %39 = dma.done [#allocation7], 256
    $region17: #{tpu_custom_call.1} parent=1 // pred_fallthru
      _
    %p40 = scmp.eq.s32.totalorder 0, 0
    // Predicated region
    $region18: #{tpu_custom_call.1} parent=1 // pred_check
      %p41 = pneg %p40
    $region19: #{tpu_custom_call.1} parent=1 // pred_check_branch
      %43 = sbr.rel (%p41) target = $region21
    $region20: #{tpu_custom_call.1} parent=1 // pred_region
      %44 = vst [vmem:[#allocation2] sm:$0xff] 0.0
    $region21: #{tpu_custom_call.1} parent=1 // pred_fallthru
      _
    %v45 = vld [vmem:[#allocation3] sm:$0xff]
    %v46 = vld [vmem:[#allocation3 + $0x8] sm:$0xff]
    %v47 = vld [vmem:[#allocation6] sm:$0xff]
    %v48 = vld [vmem:[#allocation6 + $0x8] sm:$0xff]
    %v49 = vsub.f32 %v47, %v45
    %v50 = vsub.f32 %v48, %v46
    %v51 = vmul.f32 %v49, -0.1
    %v52 = vmul.f32 %v50, -0.1
    %v53 = vmul.f32 %v49, 0.9
    %v54 = vmul.f32 %v50, 0.9
    %v55 = vmax.f32 %v51, %v53
    %v56 = vmax.f32 %v52, %v54
    %v57 = vld [vmem:[#allocation2] sm:$0xff]
    %v58 = vadd.f32 %v55, %v56
    %v59 = vadd.f32 %v57, %v58
    %60 = vst [vmem:[#allocation2] sm:$0xff] %v59
    // Predicated region
    $region22: #{tpu_custom_call.1} parent=1 // pred_check
      %p61 = pneg %p40
    $region23: #{tpu_custom_call.1} parent=1 // pred_check_branch
      %63 = sbr.rel (%p61) target = $region25
    $region24: #{tpu_custom_call.1} parent=1 // pred_region
      %v64 = vld [vmem:[#allocation2] sm:$0xff]
      %v65 = vmul.f32 %v64, 0.00048828125
      %66 = vst [vmem:[#allocation8] sm:$0xff] %v65
    $region25: #{tpu_custom_call.1} parent=1 // pred_fallthru
      _
    // Predicated region
    $region26: #{tpu_custom_call.1} parent=1 // pred_check
      _
    $region27: #{tpu_custom_call.1} parent=1 // pred_check_branch
      %68 = sbr.rel (0) target = $region29
    $region28: #{tpu_custom_call.1} parent=1 // pred_region
      %s70 = ssub.s32 128, 128
      %71 = vsyncadd [#allocation5], %s70
      %s73 = sshll.u32 [#allocation8], 4
      %s74 = int_to_ptr.vmem [resolvable:$true] %s73
      %76 = dma.vmem_to_hbm [thread:$0]  %s74, 128, %s2, [#allocation5]
    $region29: #{tpu_custom_call.1} parent=1 // pred_fallthru
      _
    // Predicated region
    $region30: #{tpu_custom_call.1} parent=1 // pred_check
      _
    $region31: #{tpu_custom_call.1} parent=1 // pred_check_branch
      %78 = sbr.rel (0) target = $region33
    $region32: #{tpu_custom_call.1} parent=1 // pred_region
      %79 = dma.done [#allocation5], 128
    $region33: #{tpu_custom_call.1} parent=1 // pred_fallthru
      _
    %80 = vsyncpa [#allocation4], 1
    %81 = vsyncpa [#allocation7], 1
    %82 = vsyncpa [#allocation5], 1

</llo_original>
